<compile_context>
chip_gen: v5e
topology: v5e:2x2
jax: 0.10.0
libtpu: 0.0.40
codegen_flags: <defaults>
</compile_context>

<pallas_src>
import jax
import jax.numpy as jnp
from jax.experimental import pallas as pl
from jax.experimental.pallas import tpu as pltpu


EPS = 1e-9
_LANE = 128
# Total per-step VMEM budget (in + out + both stat tiles, double buffered).
_VMEM_BUDGET = 36 << 20
_VMEM_LIMIT = 48 << 20


def _dsnorm_kernel(mean_ref, scale_ref, x_ref, o_ref):
    # mean_ref/scale_ref: (rows, 1) f32; x_ref/o_ref: (rows, lanes) x.dtype.
    # One broadcasted subtract + multiply per vreg; no scalar sqrt/div inside.
    xc = x_ref[...].astype(jnp.float32) - mean_ref[...]
    o_ref[...] = (xc * scale_ref[...]).astype(o_ref.dtype)


def _choose_blocks(R, HW, itemsize):
    """Pick (rows_per_block, lane_block) from a double-buffered VMEM budget."""
    # Sublane quantum: 8 rows for 4-byte dtypes, 16 for bf16, 32 for int8/fp8.
    quantum = max(8, 32 // itemsize)

    # Tile the lane axis only if a quantum-row slab of x (+ output) would not
    # fit the budget (very large H*W); otherwise keep the full row lane-dense.
    max_lane_bytes = _VMEM_BUDGET // (2 * 2 * quantum)   # 2 bufs x (in + out)
    if HW * itemsize > max_lane_bytes and HW > _LANE:
        lane_block = max(_LANE, (max_lane_bytes // itemsize) // _LANE * _LANE)
        lane_block = min(lane_block, (HW // _LANE) * _LANE)
    else:
        lane_block = HW

    # Per-row VMEM footprint: x in + out block rows, plus the two (rows, 1)
    # f32 stat tiles whose lane dim is padded to 128 in VMEM.
    per_row = 2 * lane_block * itemsize + 2 * _LANE * 4
    rows = _VMEM_BUDGET // (2 * per_row)                 # 2 = double buffering
    rows = max(quantum, (rows // quantum) * quantum)
    rows = min(rows, pl.cdiv(R, quantum) * quantum)
    return rows, lane_block


def dataset_norm_2d(x, running_mean, running_var):
    """x: (N, C, H, W); running_mean/var: (C,) float32."""
    N, C, H, W = x.shape
    HW = H * W
    R = N * C
    itemsize = x.dtype.itemsize

    # Per-channel stats -> per-(n, c)-row columns, computed once in the
    # wrapper (negligible cost; exact 1/sqrt keeps precision even at var==0).
    scale_c = 1.0 / jnp.sqrt(running_var.astype(jnp.float32) + EPS)
    mean_c = running_mean.astype(jnp.float32)
    mean = jnp.broadcast_to(mean_c[None, :], (N, C)).reshape(R, 1)
    scale = jnp.broadcast_to(scale_c[None, :], (N, C)).reshape(R, 1)

    # Free view: every (n, c) row of NCHW is contiguous; lane axis = H*W.
    x2 = x.reshape(R, HW)

    rows_per_block, lane_block = _choose_blocks(R, HW, itemsize)
    grid = (pl.cdiv(R, rows_per_block), pl.cdiv(HW, lane_block))

    x_spec = pl.BlockSpec((rows_per_block, lane_block), lambda i, j: (i, j))
    stat_spec = pl.BlockSpec((rows_per_block, 1), lambda i, j: (i, 0))

    cost = pl.CostEstimate(
        flops=2 * R * HW,
        bytes_accessed=2 * R * HW * itemsize + 2 * R * 4,
        transcendentals=0,
    )

    y2 = pl.pallas_call(
        _dsnorm_kernel,
        out_shape=jax.ShapeDtypeStruct((R, HW), x.dtype),
        grid_spec=pltpu.PrefetchScalarGridSpec(
            num_scalar_prefetch=0,
            grid=grid,
            in_specs=[stat_spec, stat_spec, x_spec],
            out_specs=x_spec,
        ),
        compiler_params=pltpu.CompilerParams(
            dimension_semantics=("parallel", "parallel"),
            vmem_limit_bytes=_VMEM_LIMIT,
        ),
        cost_estimate=cost,
    )(mean, scale, x2)

    return y2.reshape(N, C, H, W)


def dataset_norm_2d_ref(x, running_mean, running_var):
    mu = running_mean[None, :, None, None]
    var = running_var[None, :, None, None]
    return (x - mu) / jnp.sqrt(var + EPS)


if __name__ == "__main__":
    key = jax.random.PRNGKey(0)
    N, C, H, W = 2, 4, 16, 16
    x = jax.random.normal(key, (N, C, H, W), dtype=jnp.float32)

    # Buffers initialized exactly as in DatasetNorm2d.__init__ (zeros).
    running_mean = jnp.zeros((C,), dtype=jnp.float32)
    running_var = jnp.zeros((C,), dtype=jnp.float32)

    y = dataset_norm_2d(x, running_mean, running_var)
    y = jax.block_until_ready(y)

    y_ref = dataset_norm_2d_ref(x, running_mean, running_var)
    assert y.shape == (N, C, H, W)
    assert jnp.allclose(y, y_ref, rtol=1e-5, atol=1e-5), "mismatch vs reference"

    print("KERNEL_OK")
</pallas_src>

<mosaic_0001>
module attributes {stable_mosaic.version = 11 : i64} {
  func.func @_dsnorm_kernel(%arg0: i32, %arg1: i32, %arg2: memref<8x1xf32, #tpu.memory_space<vmem>>, %arg3: memref<8x1xf32, #tpu.memory_space<vmem>>, %arg4: memref<8x256xf32, #tpu.memory_space<vmem>>, %arg5: memref<8x256xf32, #tpu.memory_space<vmem>>) attributes {dimension_semantics = [#tpu.dimension_semantics<parallel>, #tpu.dimension_semantics<parallel>], iteration_bounds = array<i64: 1, 1>, scalar_prefetch = 0 : i64, scratch_operands = 0 : i64, tpu.core_type = #tpu.core_type<tc>, window_params = [{transform_indices = @transform_0, window_bounds = array<i64: 8, 1>}, {transform_indices = @transform_1, window_bounds = array<i64: 8, 1>}, {transform_indices = @transform_2, window_bounds = array<i64: 8, 256>}, {transform_indices = @transform_3, window_bounds = array<i64: 8, 256>}]} {
    %c0 = arith.constant 0 : index
    %c0_0 = arith.constant 0 : index
    %0 = vector.load %arg4[%c0, %c0_0] : memref<8x256xf32, #tpu.memory_space<vmem>>, vector<8x256xf32>
    %c0_1 = arith.constant 0 : index
    %c0_2 = arith.constant 0 : index
    %1 = vector.load %arg2[%c0_1, %c0_2] : memref<8x1xf32, #tpu.memory_space<vmem>>, vector<8x1xf32>
    %2 = vector.broadcast %1 : vector<8x1xf32> to vector<8x256xf32>
    %3 = arith.subf %0, %2 : vector<8x256xf32>
    %c0_3 = arith.constant 0 : index
    %c0_4 = arith.constant 0 : index
    %4 = vector.load %arg3[%c0_3, %c0_4] : memref<8x1xf32, #tpu.memory_space<vmem>>, vector<8x1xf32>
    %5 = vector.broadcast %4 : vector<8x1xf32> to vector<8x256xf32>
    %6 = arith.mulf %3, %5 : vector<8x256xf32>
    %c0_5 = arith.constant 0 : index
    %c0_6 = arith.constant 0 : index
    %7 = vector.load %arg5[%c0_5, %c0_6] : memref<8x256xf32, #tpu.memory_space<vmem>>, vector<8x256xf32>
    tpu.vector_store %arg5[%c0_5, %c0_6], %6 {strides = array<i32>} : memref<8x256xf32, #tpu.memory_space<vmem>>, vector<8x256xf32>,
    return
  }
  func.func @transform_0(%arg0: i32, %arg1: i32) -> (i32, i32) {
    %c0_i32 = arith.constant 0 : i32
    %c0_i32_0 = arith.constant 0 : i32
    return %arg0, %c0_i32 : i32, i32
  }
  func.func @transform_1(%arg0: i32, %arg1: i32) -> (i32, i32) {
    %c0_i32 = arith.constant 0 : i32
    %c0_i32_0 = arith.constant 0 : i32
    return %arg0, %c0_i32 : i32, i32
  }
  func.func @transform_2(%arg0: i32, %arg1: i32) -> (i32, i32) {
    %c0_i32 = arith.constant 0 : i32
    return %arg0, %arg1 : i32, i32
  }
  func.func @transform_3(%arg0: i32, %arg1: i32) -> (i32, i32) {
    %c0_i32 = arith.constant 0 : i32
    return %arg0, %arg1 : i32, i32
  }
}

</mosaic_0001>

<llo_original>
// kernel: tpu_custom_call.1
$region0: #{tpu_custom_call.1}
  #allocation0 [shape = 'u32[]', space=smem, size = 0x4, offset = 0x4, fixed_abs, tag = 'smem constant byte address 0x4 - core index']
  #allocation1 [shape = 'u32[72,128]{1,0:T(1,128)}', space=vmem, size = 0x9000, scoped, tag = 'internal scratch']
  %s0 = inlined_call_operand.vmem [shape: f32[8,1], index: 0, kind: input, shape index: {}]
  %s1 = inlined_call_operand.vmem [shape: f32[8,1], index: 1, kind: input, shape index: {}]
  %s2 = inlined_call_operand.vmem [shape: f32[8,256], index: 2, kind: input, shape index: {}]
  %s3 = inlined_call_operand.hbm [shape: f32[8,256], index: 3, kind: output, shape index: {}]
  %s4 = sld [smem:[#allocation0]]
  $region22: #{tpu_custom_call.1} parent=0
    _
  %s6 = ssub.s32 1, %s4
  %s7 = scalar_select 0, %s6, %s4
  $region1: #{tpu_custom_call.1} parent=0
    #allocation2 [shape = 'u8[8192]{0}', space=vmem, size = 0x2000, scoped, tag = 'output window, operand 0, single buffered']
    #allocation3 [shape = 's32[1]{0}', space=sflag, size = 0x4, scoped, tag = 'scoped memory for tpu_custom_call.1']
    %8 = vsyncpa [#allocation3], 0
    // Predicated region
    $region2: #{tpu_custom_call.1} parent=1 // pred_check
      _
    $region3: #{tpu_custom_call.1} parent=1 // pred_check_branch
      %10 = sbr.rel (0) target = $region5
    $region4: #{tpu_custom_call.1} parent=1 // pred_region
      _
    $region5: #{tpu_custom_call.1} parent=1 // pred_fallthru
      _
    // Predicated region
    $region6: #{tpu_custom_call.1} parent=1 // pred_check
      _
    $region7: #{tpu_custom_call.1} parent=1 // pred_check_branch
      %12 = sbr.rel (0) target = $region9
    $region8: #{tpu_custom_call.1} parent=1 // pred_region
      _
    $region9: #{tpu_custom_call.1} parent=1 // pred_fallthru
      _
    // Predicated region
    $region10: #{tpu_custom_call.1} parent=1 // pred_check
      _
    $region11: #{tpu_custom_call.1} parent=1 // pred_check_branch
      %14 = sbr.rel (0) target = $region13
    $region12: #{tpu_custom_call.1} parent=1 // pred_region
      _
    $region13: #{tpu_custom_call.1} parent=1 // pred_fallthru
      _
    %v15 = vld [vmem:[%s2] sm:$0xff]
    %v16 = vld [vmem:[%s2 + $0x8] sm:$0xff]
    %v17 = vld [vmem:[%s0] sm:$0xff]
    %19 = vset.pattern.permute.xlu0 0
    %20 = vperm.xlu0 %19, %v17
    %v21 = vpop.permute.xlu0 %20
    %v23 = vsub.f32 %v15, %v21
    %v24 = vsub.f32 %v16, %v21
    %v25 = vld [vmem:[%s1] sm:$0xff]
    %27 = vset.pattern.permute.xlu0 0
    %28 = vperm.xlu0 %27, %v25
    %v29 = vpop.permute.xlu0 %28
    %v31 = vmul.f32 %v23, %v29
    %v32 = vmul.f32 %v24, %v29
    %33 = vst [vmem:[#allocation2] sm:$0xff] %v31
    %34 = vst [vmem:[#allocation2 + $0x8] sm:$0xff] %v32
    // Predicated region
    $region14: #{tpu_custom_call.1} parent=1 // pred_check
      _
    $region15: #{tpu_custom_call.1} parent=1 // pred_check_branch
      %36 = sbr.rel (0) target = $region17
    $region16: #{tpu_custom_call.1} parent=1 // pred_region
      %38 = vsyncadd [#allocation3], 0
      %s40 = sshll.u32 [#allocation2], 4
      %s41 = int_to_ptr.vmem [resolvable:$true] %s40
      %s42 = sshll.u32 %s3, 4
      %s43 = int_to_ptr.hbm [resolvable:$true] %s42
      %45 = dma.vmem_to_hbm [thread:$0]  %s41, 256, %s43, [#allocation3]
    $region17: #{tpu_custom_call.1} parent=1 // pred_fallthru
      _
    // Predicated region
    $region18: #{tpu_custom_call.1} parent=1 // pred_check
      _
    $region19: #{tpu_custom_call.1} parent=1 // pred_check_branch
      %47 = sbr.rel (0) target = $region21
    $region20: #{tpu_custom_call.1} parent=1 // pred_region
      %49 = dma.done [#allocation3], 256
    $region21: #{tpu_custom_call.1} parent=1 // pred_fallthru
      _
    %50 = vsyncpa [#allocation3], 1

</llo_original>
